<compile_context>
chip_gen: v7x
topology: tpu7x:2x2x1
jax: 0.10.0
libtpu: 0.0.40
codegen_flags: <defaults>
</compile_context>

<pallas_src>
import jax
import jax.numpy as jnp
from jax.experimental import pallas as pl
from jax.experimental.pallas import tpu as pltpu


def _round_up(n: int, m: int) -> int:
    return ((n + m - 1) // m) * m


def shallow_linear_kernel(x_ref,
                          w1_ref, b1_ref,
                          w2_ref, b2_ref,
                          w3_ref, b3_ref,
                          w4_ref, b4_ref,
                          out_ref):
    """Fused 4-layer MLP forward in lane-major (feature, batch) layout.

    x_ref:   (1, TN)       batch tile on the lane axis
    wK_ref:  (outK, inK)   PyTorch nn.Linear weight layout
    bK_ref:  (outK, 1)     bias as a column (broadcast over lanes)
    out_ref: (2, TN)
    """
    x_row = x_ref[...]                                                # (1, TN)

    # Layer 1 (K=1): outer product on the VPU, no MXU traffic.
    h = jnp.maximum(w1_ref[...] * x_row + b1_ref[...], 0.0)          # (64, TN)
    # TODO(synk): training-mode dropout (p>0) would use pltpu.prng_seed +
    # pltpu.stateful_bernoulli here; eval-mode forward is identity.

    # Layers 2-3: 64x64 matmuls on the MXU, f32 accumulation; ReLU on the VPU.
    h = jnp.maximum(
        jnp.dot(w2_ref[...], h, preferred_element_type=jnp.float32) + b2_ref[...],
        0.0)                                                          # (64, TN)
    h = jnp.maximum(
        jnp.dot(w3_ref[...], h, preferred_element_type=jnp.float32) + b3_ref[...],
        0.0)                                                          # (64, TN)

    # Layer 4: (2, 64) @ (64, TN) -> (2, TN), unmasked lane-dense store.
    out = jnp.dot(w4_ref[...], h, preferred_element_type=jnp.float32) + b4_ref[...]
    out_ref[...] = out.astype(out_ref.dtype)


def shallow_linear_forward(x, params, *, max_tile=1024):
    """Run the fused MLP kernel. x: (N, 1) f32. Returns (out0, out1), each (N, 1)."""
    (w1, b1), (w2, b2), (w3, b3), (w4, b4) = params
    n = x.shape[0]
    d_out = w4.shape[0]

    # Pad the batch to a multiple of the (128-aligned) lane tile; padded lanes compute
    # garbage that is sliced off afterwards.
    n_pad = _round_up(max(n, 1), 128)
    tn = min(max_tile, n_pad)
    n_pad = _round_up(n_pad, tn)

    x_row = jnp.pad(x.reshape(1, n), ((0, 0), (0, n_pad - n)))       # (1, n_pad)

    grid = (n_pad // tn,)

    # Weights / biases: full-array blocks, constant index_map -> VMEM-resident across
    # all grid steps (fetched once, reused every batch tile).
    def resident(a):
        return pl.BlockSpec(a.shape, lambda i: (0,) * a.ndim)

    flops_per_row = 2 * (1 * 64 + 64 * 64 + 64 * 64 + 64 * d_out)    # ~16.6 KFLOP / row
    param_bytes = 4 * sum(int(a.size) for pair in params for a in pair)
    cost = pl.CostEstimate(
        flops=flops_per_row * n_pad,
        transcendentals=0,
        bytes_accessed=(4 + 4 * d_out) * n_pad + param_bytes,
    )

    out = pl.pallas_call(
        shallow_linear_kernel,
        out_shape=jax.ShapeDtypeStruct((d_out, n_pad), jnp.float32),
        grid=grid,
        in_specs=[pl.BlockSpec((1, tn), lambda i: (0, i)),
                  resident(w1), resident(b1),
                  resident(w2), resident(b2),
                  resident(w3), resident(b3),
                  resident(w4), resident(b4)],
        out_specs=pl.BlockSpec((d_out, tn), lambda i: (0, i)),
        compiler_params=pltpu.CompilerParams(
            dimension_semantics=("parallel",)),
        cost_estimate=cost,
    )(x_row, w1, b1, w2, b2, w3, b3, w4, b4)

    # (2, n_pad) lane-major output: the two heads are contiguous rows -> cheap slices.
    out0 = out[0, :n].reshape(n, 1)
    out1 = out[1, :n].reshape(n, 1)
    return out0, out1


def init_params(key):
    """Deterministic init mimicking nn.Linear: weight (out, in), bias (out, 1)."""
    dims = [1, 64, 64, 64, 2]  # D_in, H1, H2, H3, D_out
    params = []
    for i in range(4):
        fan_in, fan_out = dims[i], dims[i + 1]
        key, kw, kb = jax.random.split(key, 3)
        bound = 1.0 / jnp.sqrt(fan_in)
        w = jax.random.uniform(kw, (fan_out, fan_in), jnp.float32, -bound, bound)
        b = jax.random.uniform(kb, (fan_out, 1), jnp.float32, -bound, bound)
        params.append((w, b))
    return params


def reference_forward(x, params):
    """Pure-JAX reference of the same forward pass (dropout = identity)."""
    (w1, b1), (w2, b2), (w3, b3), (w4, b4) = params
    h = jnp.maximum(x @ w1.T + b1.T, 0.0)
    h = jnp.maximum(h @ w2.T + b2.T, 0.0)
    h = jnp.maximum(h @ w3.T + b3.T, 0.0)
    out = h @ w4.T + b4.T
    return out[:, 0:1], out[:, 1:2]


if __name__ == "__main__":
    key = jax.random.PRNGKey(0)
    key, kx = jax.random.split(key)

    batch = 8
    x = jax.random.normal(kx, (batch, 1), jnp.float32)

    params = init_params(key)

    out0, out1 = shallow_linear_forward(x, params)
    out0 = jax.block_until_ready(out0)
    out1 = jax.block_until_ready(out1)

    ref0, ref1 = reference_forward(x, params)
    assert out0.shape == (batch, 1) and out1.shape == (batch, 1)
    assert jnp.allclose(out0, ref0, atol=1e-5, rtol=1e-5)
    assert jnp.allclose(out1, ref1, atol=1e-5, rtol=1e-5)

    print("KERNEL_OK")
</pallas_src>

<mosaic_0001>
module attributes {stable_mosaic.version = 11 : i64} {
  func.func @shallow_linear_kernel(%arg0: i32, %arg1: memref<1x128xf32, #tpu.memory_space<vmem>>, %arg2: memref<64x1xf32, #tpu.memory_space<vmem>>, %arg3: memref<64x1xf32, #tpu.memory_space<vmem>>, %arg4: memref<64x64xf32, #tpu.memory_space<vmem>>, %arg5: memref<64x1xf32, #tpu.memory_space<vmem>>, %arg6: memref<64x64xf32, #tpu.memory_space<vmem>>, %arg7: memref<64x1xf32, #tpu.memory_space<vmem>>, %arg8: memref<2x64xf32, #tpu.memory_space<vmem>>, %arg9: memref<2x1xf32, #tpu.memory_space<vmem>>, %arg10: memref<2x128xf32, #tpu.memory_space<vmem>>) attributes {dimension_semantics = [#tpu.dimension_semantics<parallel>], iteration_bounds = array<i64: 1>, scalar_prefetch = 0 : i64, scratch_operands = 0 : i64, tpu.core_type = #tpu.core_type<tc>, window_params = [{transform_indices = @transform_0, window_bounds = array<i64: 1, 128>}, {pipeline_mode = #tpu.pipeline_mode<synchronous>, transform_indices = @transform_1, window_bounds = array<i64: 64, 1>}, {pipeline_mode = #tpu.pipeline_mode<synchronous>, transform_indices = @transform_2, window_bounds = array<i64: 64, 1>}, {pipeline_mode = #tpu.pipeline_mode<synchronous>, transform_indices = @transform_3, window_bounds = array<i64: 64, 64>}, {pipeline_mode = #tpu.pipeline_mode<synchronous>, transform_indices = @transform_4, window_bounds = array<i64: 64, 1>}, {pipeline_mode = #tpu.pipeline_mode<synchronous>, transform_indices = @transform_5, window_bounds = array<i64: 64, 64>}, {pipeline_mode = #tpu.pipeline_mode<synchronous>, transform_indices = @transform_6, window_bounds = array<i64: 64, 1>}, {pipeline_mode = #tpu.pipeline_mode<synchronous>, transform_indices = @transform_7, window_bounds = array<i64: 2, 64>}, {pipeline_mode = #tpu.pipeline_mode<synchronous>, transform_indices = @transform_8, window_bounds = array<i64: 2, 1>}, {transform_indices = @transform_9, window_bounds = array<i64: 2, 128>}]} {
    %c0 = arith.constant 0 : index
    %c0_0 = arith.constant 0 : index
    %0 = vector.load %arg1[%c0, %c0_0] : memref<1x128xf32, #tpu.memory_space<vmem>>, vector<1x128xf32>
    %c0_1 = arith.constant 0 : index
    %c0_2 = arith.constant 0 : index
    %1 = vector.load %arg2[%c0_1, %c0_2] : memref<64x1xf32, #tpu.memory_space<vmem>>, vector<64x1xf32>
    %2 = vector.broadcast %1 : vector<64x1xf32> to vector<64x128xf32>
    %3 = vector.broadcast %0 : vector<1x128xf32> to vector<64x128xf32>
    %4 = arith.mulf %2, %3 : vector<64x128xf32>
    %c0_3 = arith.constant 0 : index
    %c0_4 = arith.constant 0 : index
    %5 = vector.load %arg3[%c0_3, %c0_4] : memref<64x1xf32, #tpu.memory_space<vmem>>, vector<64x1xf32>
    %6 = vector.broadcast %5 : vector<64x1xf32> to vector<64x128xf32>
    %7 = arith.addf %4, %6 : vector<64x128xf32>
    %cst = arith.constant 0.000000e+00 : f32
    %8 = vector.broadcast %cst : f32 to vector<64x128xf32>
    %9 = arith.maximumf %7, %8 : vector<64x128xf32>
    %c0_5 = arith.constant 0 : index
    %c0_6 = arith.constant 0 : index
    %10 = vector.load %arg4[%c0_5, %c0_6] : memref<64x64xf32, #tpu.memory_space<vmem>>, vector<64x64xf32>
    %cst_7 = arith.constant dense<0.000000e+00> : vector<64x128xf32>
    %11 = tpu.matmul %10, %9, %cst_7 {dimension_numbers = #tpu.dot_dimension_numbers<[1], [0], [0], [1], [0, 0, 1, 1], [], []>} : vector<64x64xf32>, vector<64x128xf32>, vector<64x128xf32> -> vector<64x128xf32>
    %c0_8 = arith.constant 0 : index
    %c0_9 = arith.constant 0 : index
    %12 = vector.load %arg5[%c0_8, %c0_9] : memref<64x1xf32, #tpu.memory_space<vmem>>, vector<64x1xf32>
    %13 = vector.broadcast %12 : vector<64x1xf32> to vector<64x128xf32>
    %14 = arith.addf %11, %13 : vector<64x128xf32>
    %cst_10 = arith.constant 0.000000e+00 : f32
    %15 = vector.broadcast %cst_10 : f32 to vector<64x128xf32>
    %16 = arith.maximumf %14, %15 : vector<64x128xf32>
    %c0_11 = arith.constant 0 : index
    %c0_12 = arith.constant 0 : index
    %17 = vector.load %arg6[%c0_11, %c0_12] : memref<64x64xf32, #tpu.memory_space<vmem>>, vector<64x64xf32>
    %cst_13 = arith.constant dense<0.000000e+00> : vector<64x128xf32>
    %18 = tpu.matmul %17, %16, %cst_13 {dimension_numbers = #tpu.dot_dimension_numbers<[1], [0], [0], [1], [0, 0, 1, 1], [], []>} : vector<64x64xf32>, vector<64x128xf32>, vector<64x128xf32> -> vector<64x128xf32>
    %c0_14 = arith.constant 0 : index
    %c0_15 = arith.constant 0 : index
    %19 = vector.load %arg7[%c0_14, %c0_15] : memref<64x1xf32, #tpu.memory_space<vmem>>, vector<64x1xf32>
    %20 = vector.broadcast %19 : vector<64x1xf32> to vector<64x128xf32>
    %21 = arith.addf %18, %20 : vector<64x128xf32>
    %cst_16 = arith.constant 0.000000e+00 : f32
    %22 = vector.broadcast %cst_16 : f32 to vector<64x128xf32>
    %23 = arith.maximumf %21, %22 : vector<64x128xf32>
    %c0_17 = arith.constant 0 : index
    %c0_18 = arith.constant 0 : index
    %24 = vector.load %arg8[%c0_17, %c0_18] : memref<2x64xf32, #tpu.memory_space<vmem>>, vector<2x64xf32>
    %cst_19 = arith.constant dense<0.000000e+00> : vector<2x128xf32>
    %25 = tpu.matmul %24, %23, %cst_19 {dimension_numbers = #tpu.dot_dimension_numbers<[1], [0], [0], [1], [0, 0, 1, 1], [], []>} : vector<2x64xf32>, vector<64x128xf32>, vector<2x128xf32> -> vector<2x128xf32>
    %c0_20 = arith.constant 0 : index
    %c0_21 = arith.constant 0 : index
    %26 = vector.load %arg9[%c0_20, %c0_21] : memref<2x1xf32, #tpu.memory_space<vmem>>, vector<2x1xf32>
    %27 = vector.broadcast %26 : vector<2x1xf32> to vector<2x128xf32>
    %28 = arith.addf %25, %27 : vector<2x128xf32>
    %c0_22 = arith.constant 0 : index
    %c0_23 = arith.constant 0 : index
    %29 = vector.load %arg10[%c0_22, %c0_23] : memref<2x128xf32, #tpu.memory_space<vmem>>, vector<2x128xf32>
    tpu.vector_store %arg10[%c0_22, %c0_23], %28 {strides = array<i32>} : memref<2x128xf32, #tpu.memory_space<vmem>>, vector<2x128xf32>,
    return
  }
  func.func @transform_0(%arg0: i32) -> (i32, i32) {
    %c0_i32 = arith.constant 0 : i32
    %c0_i32_0 = arith.constant 0 : i32
    return %c0_i32, %arg0 : i32, i32
  }
  func.func @transform_1(%arg0: i32) -> (i32, i32) {
    %c0_i32 = arith.constant 0 : i32
    %c0_i32_0 = arith.constant 0 : i32
    %c0_i32_1 = arith.constant 0 : i32
    return %c0_i32, %c0_i32_0 : i32, i32
  }
  func.func @transform_2(%arg0: i32) -> (i32, i32) {
    %c0_i32 = arith.constant 0 : i32
    %c0_i32_0 = arith.constant 0 : i32
    %c0_i32_1 = arith.constant 0 : i32
    return %c0_i32, %c0_i32_0 : i32, i32
  }
  func.func @transform_3(%arg0: i32) -> (i32, i32) {
    %c0_i32 = arith.constant 0 : i32
    %c0_i32_0 = arith.constant 0 : i32
    %c0_i32_1 = arith.constant 0 : i32
    return %c0_i32, %c0_i32_0 : i32, i32
  }
  func.func @transform_4(%arg0: i32) -> (i32, i32) {
    %c0_i32 = arith.constant 0 : i32
    %c0_i32_0 = arith.constant 0 : i32
    %c0_i32_1 = arith.constant 0 : i32
    return %c0_i32, %c0_i32_0 : i32, i32
  }
  func.func @transform_5(%arg0: i32) -> (i32, i32) {
    %c0_i32 = arith.constant 0 : i32
    %c0_i32_0 = arith.constant 0 : i32
    %c0_i32_1 = arith.constant 0 : i32
    return %c0_i32, %c0_i32_0 : i32, i32
  }
  func.func @transform_6(%arg0: i32) -> (i32, i32) {
    %c0_i32 = arith.constant 0 : i32
    %c0_i32_0 = arith.constant 0 : i32
    %c0_i32_1 = arith.constant 0 : i32
    return %c0_i32, %c0_i32_0 : i32, i32
  }
  func.func @transform_7(%arg0: i32) -> (i32, i32) {
    %c0_i32 = arith.constant 0 : i32
    %c0_i32_0 = arith.constant 0 : i32
    %c0_i32_1 = arith.constant 0 : i32
    return %c0_i32, %c0_i32_0 : i32, i32
  }
  func.func @transform_8(%arg0: i32) -> (i32, i32) {
    %c0_i32 = arith.constant 0 : i32
    %c0_i32_0 = arith.constant 0 : i32
    %c0_i32_1 = arith.constant 0 : i32
    return %c0_i32, %c0_i32_0 : i32, i32
  }
  func.func @transform_9(%arg0: i32) -> (i32, i32) {
    %c0_i32 = arith.constant 0 : i32
    %c0_i32_0 = arith.constant 0 : i32
    return %c0_i32, %arg0 : i32, i32
  }
}

</mosaic_0001>

<llo_original>
// kernel: tpu_custom_call.1
$region0: #{tpu_custom_call.1}
  #allocation0 [shape = 'u32[]', space=smem, size = 0x4, offset = 0x4, fixed_abs, tag = 'smem constant byte address 0x4 - core index']
  #allocation1 [shape = 'u32[144,128]{1,0:T(1,128)}', space=vmem, size = 0x12000, scoped, tag = 'internal scratch']
  %s0 = inlined_call_operand.vmem [shape: f32[1,128], index: 0, kind: input, shape index: {}]
  %s1 = inlined_call_operand.vmem [shape: f32[64,1], index: 1, kind: input, shape index: {}]
  %s2 = inlined_call_operand.vmem [shape: f32[64,1], index: 2, kind: input, shape index: {}]
  %s3 = inlined_call_operand.vmem [shape: f32[64,64], index: 3, kind: input, shape index: {}]
  %s4 = inlined_call_operand.vmem [shape: f32[64,1], index: 4, kind: input, shape index: {}]
  %s5 = inlined_call_operand.vmem [shape: f32[64,64], index: 5, kind: input, shape index: {}]
  %s6 = inlined_call_operand.vmem [shape: f32[64,1], index: 6, kind: input, shape index: {}]
  %s7 = inlined_call_operand.vmem [shape: f32[2,64], index: 7, kind: input, shape index: {}]
  %s8 = inlined_call_operand.vmem [shape: f32[2,1], index: 8, kind: input, shape index: {}]
  %s9 = inlined_call_operand.hbm [shape: f32[2,128], index: 9, kind: output, shape index: {}]
  %s10 = sld [smem:[#allocation0]]
  $region46: #{tpu_custom_call.1} parent=0
    _
  %s12 = ssub.s32 1, %s10
  %s13 = scalar_select 0, %s12, %s10
  $region1: #{tpu_custom_call.1} parent=0
    #allocation2 [shape = 'u8[1024]{0}', space=vmem, size = 0x400, scoped, tag = 'output window, operand 0, single buffered']
    #allocation3 [shape = 's32[1]{0}', space=sflag, size = 0x4, scoped, tag = 'scoped memory for tpu_custom_call.1']
    %14 = vsyncpa [#allocation3], 0
    // Predicated region
    $region2: #{tpu_custom_call.1} parent=1 // pred_check
      _
    $region3: #{tpu_custom_call.1} parent=1 // pred_check_branch
      %16 = sbr.rel (0) target = $region5
    $region4: #{tpu_custom_call.1} parent=1 // pred_region
      _
    $region5: #{tpu_custom_call.1} parent=1 // pred_fallthru
      _
    // Predicated region
    $region6: #{tpu_custom_call.1} parent=1 // pred_check
      _
    $region7: #{tpu_custom_call.1} parent=1 // pred_check_branch
      %18 = sbr.rel (0) target = $region9
    $region8: #{tpu_custom_call.1} parent=1 // pred_region
      _
    $region9: #{tpu_custom_call.1} parent=1 // pred_fallthru
      _
    // Predicated region
    $region10: #{tpu_custom_call.1} parent=1 // pred_check
      _
    $region11: #{tpu_custom_call.1} parent=1 // pred_check_branch
      %20 = sbr.rel (0) target = $region13
    $region12: #{tpu_custom_call.1} parent=1 // pred_region
      _
    $region13: #{tpu_custom_call.1} parent=1 // pred_fallthru
      _
    // Predicated region
    $region14: #{tpu_custom_call.1} parent=1 // pred_check
      _
    $region15: #{tpu_custom_call.1} parent=1 // pred_check_branch
      %22 = sbr.rel (0) target = $region17
    $region16: #{tpu_custom_call.1} parent=1 // pred_region
      _
    $region17: #{tpu_custom_call.1} parent=1 // pred_fallthru
      _
    // Predicated region
    $region18: #{tpu_custom_call.1} parent=1 // pred_check
      _
    $region19: #{tpu_custom_call.1} parent=1 // pred_check_branch
      %24 = sbr.rel (0) target = $region21
    $region20: #{tpu_custom_call.1} parent=1 // pred_region
      _
    $region21: #{tpu_custom_call.1} parent=1 // pred_fallthru
      _
    // Predicated region
    $region22: #{tpu_custom_call.1} parent=1 // pred_check
      _
    $region23: #{tpu_custom_call.1} parent=1 // pred_check_branch
      %26 = sbr.rel (0) target = $region25
    $region24: #{tpu_custom_call.1} parent=1 // pred_region
      _
    $region25: #{tpu_custom_call.1} parent=1 // pred_fallthru
      _
    // Predicated region
    $region26: #{tpu_custom_call.1} parent=1 // pred_check
      _
    $region27: #{tpu_custom_call.1} parent=1 // pred_check_branch
      %28 = sbr.rel (0) target = $region29
    $region28: #{tpu_custom_call.1} parent=1 // pred_region
      _
    $region29: #{tpu_custom_call.1} parent=1 // pred_fallthru
      _
    // Predicated region
    $region30: #{tpu_custom_call.1} parent=1 // pred_check
      _
    $region31: #{tpu_custom_call.1} parent=1 // pred_check_branch
      %30 = sbr.rel (0) target = $region33
    $region32: #{tpu_custom_call.1} parent=1 // pred_region
      _
    $region33: #{tpu_custom_call.1} parent=1 // pred_fallthru
      _
    // Predicated region
    $region34: #{tpu_custom_call.1} parent=1 // pred_check
      _
    $region35: #{tpu_custom_call.1} parent=1 // pred_check_branch
      %32 = sbr.rel (0) target = $region37
    $region36: #{tpu_custom_call.1} parent=1 // pred_region
      _
    $region37: #{tpu_custom_call.1} parent=1 // pred_fallthru
      _
    %v33 = vld [vmem:[%s0] sm:$0x1]
    %v34 = vld [vmem:[%s1] sm:$0xff]
    %v35 = vld [vmem:[%s1 + $0x8] sm:$0xff]
    %v36 = vld [vmem:[%s1 + $0x10] sm:$0xff]
    %v37 = vld [vmem:[%s1 + $0x18] sm:$0xff]
    %v38 = vld [vmem:[%s1 + $0x20] sm:$0xff]
    %v39 = vld [vmem:[%s1 + $0x28] sm:$0xff]
    %v40 = vld [vmem:[%s1 + $0x30] sm:$0xff]
    %v41 = vld [vmem:[%s1 + $0x38] sm:$0xff]
    %43 = vset.pattern.permute.xlu0 0
    %44 = vperm.xlu0 %43, %v34
    %v45 = vpop.permute.xlu0 %44
    %48 = vset.pattern.permute.xlu0 0
    %49 = vperm.xlu0 %48, %v35
    %v50 = vpop.permute.xlu0 %49
    %53 = vset.pattern.permute.xlu0 0
    %54 = vperm.xlu0 %53, %v36
    %v55 = vpop.permute.xlu0 %54
    %58 = vset.pattern.permute.xlu0 0
    %59 = vperm.xlu0 %58, %v37
    %v60 = vpop.permute.xlu0 %59
    %63 = vset.pattern.permute.xlu0 0
    %64 = vperm.xlu0 %63, %v38
    %v65 = vpop.permute.xlu0 %64
    %68 = vset.pattern.permute.xlu0 0
    %69 = vperm.xlu0 %68, %v39
    %v70 = vpop.permute.xlu0 %69
    %73 = vset.pattern.permute.xlu0 0
    %74 = vperm.xlu0 %73, %v40
    %v75 = vpop.permute.xlu0 %74
    %78 = vset.pattern.permute.xlu0 0
    %79 = vperm.xlu0 %78, %v41
    %v80 = vpop.permute.xlu0 %79
    %v83 = vlaneseq
    %v84 = vshrl.u32 %v83, 7
    %v85 = vsub.s32 0, %v84
    %v86 = vrot.slane %v33, %v85
    %v88 = vmul.f32 %v45, %v86
    %v89 = vmul.f32 %v50, %v86
    %v90 = vmul.f32 %v55, %v86
    %v91 = vmul.f32 %v60, %v86
    %v92 = vmul.f32 %v65, %v86
    %v93 = vmul.f32 %v70, %v86
    %v94 = vmul.f32 %v75, %v86
    %v95 = vmul.f32 %v80, %v86
    %v96 = vld [vmem:[%s2] sm:$0xff]
    %v97 = vld [vmem:[%s2 + $0x8] sm:$0xff]
    %v98 = vld [vmem:[%s2 + $0x10] sm:$0xff]
    %v99 = vld [vmem:[%s2 + $0x18] sm:$0xff]
    %v100 = vld [vmem:[%s2 + $0x20] sm:$0xff]
    %v101 = vld [vmem:[%s2 + $0x28] sm:$0xff]
    %v102 = vld [vmem:[%s2 + $0x30] sm:$0xff]
    %v103 = vld [vmem:[%s2 + $0x38] sm:$0xff]
    %105 = vset.pattern.permute.xlu0 0
    %106 = vperm.xlu0 %105, %v96
    %v107 = vpop.permute.xlu0 %106
    %110 = vset.pattern.permute.xlu0 0
    %111 = vperm.xlu0 %110, %v97
    %v112 = vpop.permute.xlu0 %111
    %115 = vset.pattern.permute.xlu0 0
    %116 = vperm.xlu0 %115, %v98
    %v117 = vpop.permute.xlu0 %116
    %120 = vset.pattern.permute.xlu0 0
    %121 = vperm.xlu0 %120, %v99
    %v122 = vpop.permute.xlu0 %121
    %125 = vset.pattern.permute.xlu0 0
    %126 = vperm.xlu0 %125, %v100
    %v127 = vpop.permute.xlu0 %126
    %130 = vset.pattern.permute.xlu0 0
    %131 = vperm.xlu0 %130, %v101
    %v132 = vpop.permute.xlu0 %131
    %135 = vset.pattern.permute.xlu0 0
    %136 = vperm.xlu0 %135, %v102
    %v137 = vpop.permute.xlu0 %136
    %140 = vset.pattern.permute.xlu0 0
    %141 = vperm.xlu0 %140, %v103
    %v142 = vpop.permute.xlu0 %141
    %v144 = vadd.f32 %v88, %v107
    %v145 = vadd.f32 %v89, %v112
    %v146 = vadd.f32 %v90, %v117
    %v147 = vadd.f32 %v91, %v122
    %v148 = vadd.f32 %v92, %v127
    %v149 = vadd.f32 %v93, %v132
    %v150 = vadd.f32 %v94, %v137
    %v151 = vadd.f32 %v95, %v142
    %v152 = vmax.f32 %v144, 0.0
    %v153 = vmax.f32 %v145, 0.0
    %v154 = vmax.f32 %v146, 0.0
    %v155 = vmax.f32 %v147, 0.0
    %v156 = vmax.f32 %v148, 0.0
    %v157 = vmax.f32 %v149, 0.0
    %v158 = vmax.f32 %v150, 0.0
    %v159 = vmax.f32 %v151, 0.0
    %v160 = vld [vmem:[%s3] sm:$0xff]
    %v161 = vld [vmem:[%s3 + $0x8] sm:$0xff]
    %v162 = vld [vmem:[%s3 + $0x10] sm:$0xff]
    %v163 = vld [vmem:[%s3 + $0x18] sm:$0xff]
    %v164 = vld [vmem:[%s3 + $0x20] sm:$0xff]
    %v165 = vld [vmem:[%s3 + $0x28] sm:$0xff]
    %v166 = vld [vmem:[%s3 + $0x30] sm:$0xff]
    %v167 = vld [vmem:[%s3 + $0x38] sm:$0xff]
    %v168 = vld [vmem:[%s4] sm:$0xff]
    %v169 = vld [vmem:[%s4 + $0x8] sm:$0xff]
    %v170 = vld [vmem:[%s4 + $0x10] sm:$0xff]
    %v171 = vld [vmem:[%s4 + $0x18] sm:$0xff]
    %v172 = vld [vmem:[%s4 + $0x20] sm:$0xff]
    %v173 = vld [vmem:[%s4 + $0x28] sm:$0xff]
    %v174 = vld [vmem:[%s4 + $0x30] sm:$0xff]
    %v175 = vld [vmem:[%s4 + $0x38] sm:$0xff]
    %177 = vset.pattern.permute.xlu0 0
    %178 = vperm.xlu0 %177, %v168
    %v179 = vpop.permute.xlu0 %178
    %182 = vset.pattern.permute.xlu0 0
    %183 = vperm.xlu0 %182, %v169
    %v184 = vpop.permute.xlu0 %183
    %187 = vset.pattern.permute.xlu0 0
    %188 = vperm.xlu0 %187, %v170
    %v189 = vpop.permute.xlu0 %188
    %192 = vset.pattern.permute.xlu0 0
    %193 = vperm.xlu0 %192, %v171
    %v194 = vpop.permute.xlu0 %193
    %197 = vset.pattern.permute.xlu0 0
    %198 = vperm.xlu0 %197, %v172
    %v199 = vpop.permute.xlu0 %198
    %202 = vset.pattern.permute.xlu0 0
    %203 = vperm.xlu0 %202, %v173
    %v204 = vpop.permute.xlu0 %203
    %207 = vset.pattern.permute.xlu0 0
    %208 = vperm.xlu0 %207, %v174
    %v209 = vpop.permute.xlu0 %208
    %212 = vset.pattern.permute.xlu0 0
    %213 = vperm.xlu0 %212, %v175
    %v214 = vpop.permute.xlu0 %213
    %vm216 = vcmask 523264
    %v218 = vsel %vm216, %v160, 0
    %v221 = vsel %vm216, %v161, 0
    %v224 = vsel %vm216, %v162, 0
    %v227 = vsel %vm216, %v163, 0
    %v230 = vsel %vm216, %v164, 0
    %v233 = vsel %vm216, %v165, 0
    %v236 = vsel %vm216, %v166, 0
    %v239 = vsel %vm216, %v167, 0
    %241 = vmatprep.subr.mxu0 0.0
    %242 = vmatpush1.msra.mxu0 %v152
    %243 = vmatprep.subr.mxu0 0.0
    %244 = vmatpush1.msra.mxu0 %v153
    %245 = vmatprep.subr.mxu0 0.0
    %246 = vmatpush1.msra.mxu0 %v154
    %247 = vmatprep.subr.mxu0 0.0
    %248 = vmatpush1.msra.mxu0 %v155
    %249 = vmatprep.subr.mxu0 0.0
    %250 = vmatpush1.msra.mxu0 %v156
    %251 = vmatprep.subr.mxu0 0.0
    %252 = vmatpush1.msra.mxu0 %v157
    %253 = vmatprep.subr.mxu0 0.0
    %254 = vmatpush1.msra.mxu0 %v158
    %255 = vmatprep.subr.mxu0 0.0
    %256 = vmatpush1.msra.mxu0 %v159
    %257 = vmatprep.subr.mxu0 0.0
    %258 = vmatpush1.msra.mxu0 0.0
    %259 = vmatprep.subr.mxu0 0.0
    %260 = vmatpush1.msra.mxu0 0.0
    %261 = vmatprep.subr.mxu0 0.0
    %262 = vmatpush1.msra.mxu0 0.0
    %263 = vmatprep.subr.mxu0 0.0
    %264 = vmatpush1.msra.mxu0 0.0
    %265 = vmatprep.subr.mxu0 0.0
    %266 = vmatpush1.msra.mxu0 0.0
    %267 = vmatprep.subr.mxu0 0.0
    %268 = vmatpush1.msra.mxu0 0.0
    %269 = vmatprep.subr.mxu0 0.0
    %270 = vmatpush1.msra.mxu0 0.0
    %271 = vmatprep.subr.mxu0 0.0
    %272 = vmatpush1.msra.mxu0 0.0
    %273 = vmatprep.subr.mxu0 0.0
    %274 = vmatpush1.msra.mxu0 0.0
    %275 = vmatprep.subr.mxu0 0.0
    %276 = vmatpush1.msra.mxu0 0.0
    %277 = vmatprep.subr.mxu0 0.0
    %278 = vmatpush1.msra.mxu0 0.0
    %279 = vmatprep.subr.mxu0 0.0
    %280 = vmatpush1.msra.mxu0 0.0
    %281 = vmatprep.subr.mxu0 0.0
    %282 = vmatpush1.msra.mxu0 0.0
    %283 = vmatprep.subr.mxu0 0.0
    %284 = vmatpush1.msra.mxu0 0.0
    %285 = vmatprep.subr.mxu0 0.0
    %286 = vmatpush1.msra.mxu0 0.0
    %287 = vmatprep.subr.mxu0 0.0
    %288 = vmatpush1.msra.mxu0 0.0
    %289 = vmatprep.subr.mxu0 0.0
    %290 = vmatpush1.msra.mxu0 0.0
    %291 = vmatprep.subr.mxu0 0.0
    %292 = vmatpush1.msra.mxu0 0.0
    %293 = vmatprep.subr.mxu0 0.0
    %294 = vmatpush1.msra.mxu0 0.0
    %295 = vmatprep.subr.mxu0 0.0
    %296 = vmatpush1.msra.mxu0 0.0
    %297 = vmatprep.subr.mxu0 0.0
    %298 = vmatpush1.msra.mxu0 0.0
    %299 = vmatprep.subr.mxu0 0.0
    %300 = vmatpush1.msra.mxu0 0.0
    %301 = vmatprep.subr.mxu0 0.0
    %302 = vmatpush1.msra.mxu0 0.0
    %303 = vmatprep.subr.mxu0 0.0
    %304 = vmatpush1.msra.mxu0 0.0
    %305 = vmatprep.mubr.f32.mxu0 0.0
    %306 = vmatmul.mubr.f32.gmra.mrb[0].mxu0 %v218
    %v307 = vpop.f32.mrb[0].mxu0
    %v308 = vadd.f32 %v179, %v307
    %v309 = vpop.f32.mrb[0].mxu0
    %310 = vmatprep.mubr.f32.mxu0 0.0
    %311 = vmatmul.mubr.f32.gmra.mrb[0].mxu0 %v221
    %v312 = vpop.f32.mrb[0].mxu0
    %v313 = vadd.f32 %v184, %v312
    %v314 = vpop.f32.mrb[0].mxu0
    %315 = vmatprep.mubr.f32.mxu0 0.0
    %316 = vmatmul.mubr.f32.gmra.mrb[0].mxu0 %v224
    %v317 = vpop.f32.mrb[0].mxu0
    %v318 = vadd.f32 %v189, %v317
    %v319 = vpop.f32.mrb[0].mxu0
    %320 = vmatprep.mubr.f32.mxu0 0.0
    %321 = vmatmul.mubr.f32.gmra.mrb[0].mxu0 %v227
    %v322 = vpop.f32.mrb[0].mxu0
    %v323 = vadd.f32 %v194, %v322
    %v324 = vpop.f32.mrb[0].mxu0
    %325 = vmatprep.mubr.f32.mxu0 0.0
    %326 = vmatmul.mubr.f32.gmra.mrb[0].mxu0 %v230
    %v327 = vpop.f32.mrb[0].mxu0
    %v328 = vadd.f32 %v199, %v327
    %v329 = vpop.f32.mrb[0].mxu0
    %330 = vmatprep.mubr.f32.mxu0 0.0
    %331 = vmatmul.mubr.f32.gmra.mrb[0].mxu0 %v233
    %v332 = vpop.f32.mrb[0].mxu0
    %v333 = vadd.f32 %v204, %v332
    %v334 = vpop.f32.mrb[0].mxu0
    %335 = vmatprep.mubr.f32.mxu0 0.0
    %336 = vmatmul.mubr.f32.gmra.mrb[0].mxu0 %v236
    %v337 = vpop.f32.mrb[0].mxu0
    %v338 = vadd.f32 %v209, %v337
    %v339 = vpop.f32.mrb[0].mxu0
    %340 = vmatprep.mubr.f32.mxu0 0.0
    %341 = vmatmul.mubr.f32.gmra.mrb[0].mxu0 %v239
    %v342 = vpop.f32.mrb[0].mxu0
    %v343 = vadd.f32 %v214, %v342
    %v344 = vpop.f32.mrb[0].mxu0
    %345 = vdwg.mxu0
    %v346 = vmax.f32 %v308, 0.0
    %v347 = vmax.f32 %v313, 0.0
    %v348 = vmax.f32 %v318, 0.0
    %v349 = vmax.f32 %v323, 0.0
    %v350 = vmax.f32 %v328, 0.0
    %v351 = vmax.f32 %v333, 0.0
    %v352 = vmax.f32 %v338, 0.0
    %v353 = vmax.f32 %v343, 0.0
    %v354 = vld [vmem:[%s5] sm:$0xff]
    %v355 = vld [vmem:[%s5 + $0x8] sm:$0xff]
    %v356 = vld [vmem:[%s5 + $0x10] sm:$0xff]
    %v357 = vld [vmem:[%s5 + $0x18] sm:$0xff]
    %v358 = vld [vmem:[%s5 + $0x20] sm:$0xff]
    %v359 = vld [vmem:[%s5 + $0x28] sm:$0xff]
    %v360 = vld [vmem:[%s5 + $0x30] sm:$0xff]
    %v361 = vld [vmem:[%s5 + $0x38] sm:$0xff]
    %v362 = vld [vmem:[%s6] sm:$0xff]
    %v363 = vld [vmem:[%s6 + $0x8] sm:$0xff]
    %v364 = vld [vmem:[%s6 + $0x10] sm:$0xff]
    %v365 = vld [vmem:[%s6 + $0x18] sm:$0xff]
    %v366 = vld [vmem:[%s6 + $0x20] sm:$0xff]
    %v367 = vld [vmem:[%s6 + $0x28] sm:$0xff]
    %v368 = vld [vmem:[%s6 + $0x30] sm:$0xff]
    %v369 = vld [vmem:[%s6 + $0x38] sm:$0xff]
    %371 = vset.pattern.permute.xlu0 0
    %372 = vperm.xlu0 %371, %v362
    %v373 = vpop.permute.xlu0 %372
    %376 = vset.pattern.permute.xlu0 0
    %377 = vperm.xlu0 %376, %v363
    %v378 = vpop.permute.xlu0 %377
    %381 = vset.pattern.permute.xlu0 0
    %382 = vperm.xlu0 %381, %v364
    %v383 = vpop.permute.xlu0 %382
    %386 = vset.pattern.permute.xlu0 0
    %387 = vperm.xlu0 %386, %v365
    %v388 = vpop.permute.xlu0 %387
    %391 = vset.pattern.permute.xlu0 0
    %392 = vperm.xlu0 %391, %v366
    %v393 = vpop.permute.xlu0 %392
    %396 = vset.pattern.permute.xlu0 0
    %397 = vperm.xlu0 %396, %v367
    %v398 = vpop.permute.xlu0 %397
    %401 = vset.pattern.permute.xlu0 0
    %402 = vperm.xlu0 %401, %v368
    %v403 = vpop.permute.xlu0 %402
    %406 = vset.pattern.permute.xlu0 0
    %407 = vperm.xlu0 %406, %v369
    %v408 = vpop.permute.xlu0 %407
    %v411 = vsel %vm216, %v354, 0
    %v414 = vsel %vm216, %v355, 0
    %v417 = vsel %vm216, %v356, 0
    %v420 = vsel %vm216, %v357, 0
    %v423 = vsel %vm216, %v358, 0
    %v426 = vsel %vm216, %v359, 0
    %v429 = vsel %vm216, %v360, 0
    %v432 = vsel %vm216, %v361, 0
    %434 = vmatprep.subr.mxu0 0.0
    %435 = vmatpush1.msra.mxu0 %v346
    %436 = vmatprep.subr.mxu0 0.0
    %437 = vmatpush1.msra.mxu0 %v347
    %438 = vmatprep.subr.mxu0 0.0
    %439 = vmatpush1.msra.mxu0 %v348
    %440 = vmatprep.subr.mxu0 0.0
    %441 = vmatpush1.msra.mxu0 %v349
    %442 = vmatprep.subr.mxu0 0.0
    %443 = vmatpush1.msra.mxu0 %v350
    %444 = vmatprep.subr.mxu0 0.0
    %445 = vmatpush1.msra.mxu0 %v351
    %446 = vmatprep.subr.mxu0 0.0
    %447 = vmatpush1.msra.mxu0 %v352
    %448 = vmatprep.subr.mxu0 0.0
    %449 = vmatpush1.msra.mxu0 %v353
    %450 = vmatprep.subr.mxu0 0.0
    %451 = vmatpush1.msra.mxu0 0.0
    %452 = vmatprep.subr.mxu0 0.0
    %453 = vmatpush1.msra.mxu0 0.0
    %454 = vmatprep.subr.mxu0 0.0
    %455 = vmatpush1.msra.mxu0 0.0
    %456 = vmatprep.subr.mxu0 0.0
    %457 = vmatpush1.msra.mxu0 0.0
    %458 = vmatprep.subr.mxu0 0.0
    %459 = vmatpush1.msra.mxu0 0.0
    %460 = vmatprep.subr.mxu0 0.0
    %461 = vmatpush1.msra.mxu0 0.0
    %462 = vmatprep.subr.mxu0 0.0
    %463 = vmatpush1.msra.mxu0 0.0
    %464 = vmatprep.subr.mxu0 0.0
    %465 = vmatpush1.msra.mxu0 0.0
    %466 = vmatprep.subr.mxu0 0.0
    %467 = vmatpush1.msra.mxu0 0.0
    %468 = vmatprep.subr.mxu0 0.0
    %469 = vmatpush1.msra.mxu0 0.0
    %470 = vmatprep.subr.mxu0 0.0
    %471 = vmatpush1.msra.mxu0 0.0
    %472 = vmatprep.subr.mxu0 0.0
    %473 = vmatpush1.msra.mxu0 0.0
    %474 = vmatprep.subr.mxu0 0.0
    %475 = vmatpush1.msra.mxu0 0.0
    %476 = vmatprep.subr.mxu0 0.0
    %477 = vmatpush1.msra.mxu0 0.0
    %478 = vmatprep.subr.mxu0 0.0
    %479 = vmatpush1.msra.mxu0 0.0
    %480 = vmatprep.subr.mxu0 0.0
    %481 = vmatpush1.msra.mxu0 0.0
    %482 = vmatprep.subr.mxu0 0.0
    %483 = vmatpush1.msra.mxu0 0.0
    %484 = vmatprep.subr.mxu0 0.0
    %485 = vmatpush1.msra.mxu0 0.0
    %486 = vmatprep.subr.mxu0 0.0
    %487 = vmatpush1.msra.mxu0 0.0
    %488 = vmatprep.subr.mxu0 0.0
    %489 = vmatpush1.msra.mxu0 0.0
    %490 = vmatprep.subr.mxu0 0.0
    %491 = vmatpush1.msra.mxu0 0.0
    %492 = vmatprep.subr.mxu0 0.0
    %493 = vmatpush1.msra.mxu0 0.0
    %494 = vmatprep.subr.mxu0 0.0
    %495 = vmatpush1.msra.mxu0 0.0
    %496 = vmatprep.subr.mxu0 0.0
    %497 = vmatpush1.msra.mxu0 0.0
    %498 = vmatprep.mubr.f32.mxu0 0.0
    %499 = vmatmul.mubr.f32.gmra.mrb[0].mxu0 %v411
    %v500 = vpop.f32.mrb[0].mxu0
    %v501 = vadd.f32 %v373, %v500
    %v502 = vpop.f32.mrb[0].mxu0
    %503 = vmatprep.mubr.f32.mxu0 0.0
    %504 = vmatmul.mubr.f32.gmra.mrb[0].mxu0 %v414
    %v505 = vpop.f32.mrb[0].mxu0
    %v506 = vadd.f32 %v378, %v505
    %v507 = vpop.f32.mrb[0].mxu0
    %508 = vmatprep.mubr.f32.mxu0 0.0
    %509 = vmatmul.mubr.f32.gmra.mrb[0].mxu0 %v417
    %v510 = vpop.f32.mrb[0].mxu0
    %v511 = vadd.f32 %v383, %v510
    %v512 = vpop.f32.mrb[0].mxu0
    %513 = vmatprep.mubr.f32.mxu0 0.0
    %514 = vmatmul.mubr.f32.gmra.mrb[0].mxu0 %v420
    %v515 = vpop.f32.mrb[0].mxu0
    %v516 = vadd.f32 %v388, %v515
    %v517 = vpop.f32.mrb[0].mxu0
    %518 = vmatprep.mubr.f32.mxu0 0.0
    %519 = vmatmul.mubr.f32.gmra.mrb[0].mxu0 %v423
    %v520 = vpop.f32.mrb[0].mxu0
    %v521 = vadd.f32 %v393, %v520
    %v522 = vpop.f32.mrb[0].mxu0
    %523 = vmatprep.mubr.f32.mxu0 0.0
    %524 = vmatmul.mubr.f32.gmra.mrb[0].mxu0 %v426
    %v525 = vpop.f32.mrb[0].mxu0
    %v526 = vadd.f32 %v398, %v525
    %v527 = vpop.f32.mrb[0].mxu0
    %528 = vmatprep.mubr.f32.mxu0 0.0
    %529 = vmatmul.mubr.f32.gmra.mrb[0].mxu0 %v429
    %v530 = vpop.f32.mrb[0].mxu0
    %v531 = vadd.f32 %v403, %v530
    %v532 = vpop.f32.mrb[0].mxu0
    %533 = vmatprep.mubr.f32.mxu0 0.0
    %534 = vmatmul.mubr.f32.gmra.mrb[0].mxu0 %v432
    %v535 = vpop.f32.mrb[0].mxu0
    %v536 = vadd.f32 %v408, %v535
    %v537 = vpop.f32.mrb[0].mxu0
    %538 = vdwg.mxu0
    %v539 = vmax.f32 %v501, 0.0
    %v540 = vmax.f32 %v506, 0.0
    %v541 = vmax.f32 %v511, 0.0
    %v542 = vmax.f32 %v516, 0.0
    %v543 = vmax.f32 %v521, 0.0
    %v544 = vmax.f32 %v526, 0.0
    %v545 = vmax.f32 %v531, 0.0
    %v546 = vmax.f32 %v536, 0.0
    %v547 = vld [vmem:[%s7] sm:$0x3]
    %v548 = vld [vmem:[%s8] sm:$0x3]
    %550 = vset.pattern.permute.xlu0 0
    %551 = vperm.xlu0 %550, %v548
    %v552 = vpop.permute.xlu0 %551
    %v555 = vsel %vm216, %v547, 0
    %557 = vmatprep.subr.mxu0 0.0
    %558 = vmatpush1.msra.mxu0 %v539
    %559 = vmatprep.subr.mxu0 0.0
    %560 = vmatpush1.msra.mxu0 %v540
    %561 = vmatprep.subr.mxu0 0.0
    %562 = vmatpush1.msra.mxu0 %v541
    %563 = vmatprep.subr.mxu0 0.0
    %564 = vmatpush1.msra.mxu0 %v542
    %565 = vmatprep.subr.mxu0 0.0
    %566 = vmatpush1.msra.mxu0 %v543
    %567 = vmatprep.subr.mxu0 0.0
    %568 = vmatpush1.msra.mxu0 %v544
    %569 = vmatprep.subr.mxu0 0.0
    %570 = vmatpush1.msra.mxu0 %v545
    %571 = vmatprep.subr.mxu0 0.0
    %572 = vmatpush1.msra.mxu0 %v546
    %573 = vmatprep.subr.mxu0 0.0
    %574 = vmatpush1.msra.mxu0 0.0
    %575 = vmatprep.subr.mxu0 0.0
    %576 = vmatpush1.msra.mxu0 0.0
    %577 = vmatprep.subr.mxu0 0.0
    %578 = vmatpush1.msra.mxu0 0.0
    %579 = vmatprep.subr.mxu0 0.0
    %580 = vmatpush1.msra.mxu0 0.0
    %581 = vmatprep.subr.mxu0 0.0
    %582 = vmatpush1.msra.mxu0 0.0
    %583 = vmatprep.subr.mxu0 0.0
    %584 = vmatpush1.msra.mxu0 0.0
    %585 = vmatprep.subr.mxu0 0.0
    %586 = vmatpush1.msra.mxu0 0.0
    %587 = vmatprep.subr.mxu0 0.0
    %588 = vmatpush1.msra.mxu0 0.0
    %589 = vmatprep.subr.mxu0 0.0
    %590 = vmatpush1.msra.mxu0 0.0
    %591 = vmatprep.subr.mxu0 0.0
    %592 = vmatpush1.msra.mxu0 0.0
    %593 = vmatprep.subr.mxu0 0.0
    %594 = vmatpush1.msra.mxu0 0.0
    %595 = vmatprep.subr.mxu0 0.0
    %596 = vmatpush1.msra.mxu0 0.0
    %597 = vmatprep.subr.mxu0 0.0
    %598 = vmatpush1.msra.mxu0 0.0
    %599 = vmatprep.subr.mxu0 0.0
    %600 = vmatpush1.msra.mxu0 0.0
    %601 = vmatprep.subr.mxu0 0.0
    %602 = vmatpush1.msra.mxu0 0.0
    %603 = vmatprep.subr.mxu0 0.0
    %604 = vmatpush1.msra.mxu0 0.0
    %605 = vmatprep.subr.mxu0 0.0
    %606 = vmatpush1.msra.mxu0 0.0
    %607 = vmatprep.subr.mxu0 0.0
    %608 = vmatpush1.msra.mxu0 0.0
    %609 = vmatprep.subr.mxu0 0.0
    %610 = vmatpush1.msra.mxu0 0.0
    %611 = vmatprep.subr.mxu0 0.0
    %612 = vmatpush1.msra.mxu0 0.0
    %613 = vmatprep.subr.mxu0 0.0
    %614 = vmatpush1.msra.mxu0 0.0
    %615 = vmatprep.subr.mxu0 0.0
    %616 = vmatpush1.msra.mxu0 0.0
    %617 = vmatprep.subr.mxu0 0.0
    %618 = vmatpush1.msra.mxu0 0.0
    %619 = vmatprep.subr.mxu0 0.0
    %620 = vmatpush1.msra.mxu0 0.0
    %621 = vmatprep.mubr.f32.mxu0 0.0
    %622 = vmatmul.mubr.f32.gmra.mrb[0].mxu0 %v555
    %v623 = vpop.f32.mrb[0].mxu0
    %v624 = vadd.f32 %v552, %v623
    %v625 = vpop.f32.mrb[0].mxu0
    %626 = vdwg.mxu0
    %627 = vst [vmem:[#allocation2] sm:$0x3] %v624
    // Predicated region
    $region38: #{tpu_custom_call.1} parent=1 // pred_check
      _
    $region39: #{tpu_custom_call.1} parent=1 // pred_check_branch
      %629 = sbr.rel (0) target = $region41
    $region40: #{tpu_custom_call.1} parent=1 // pred_region
      %s631 = ssub.s32 32, 32
      %632 = vsyncadd [#allocation3], %s631
      %s634 = sshll.u32 [#allocation2], 4
      %s635 = int_to_ptr.vmem [resolvable:$true] %s634
      %637 = dma.vmem_to_hbm [thread:$0]  %s635, 32, %s9, [#allocation3]
    $region41: #{tpu_custom_call.1} parent=1 // pred_fallthru
      _
    // Predicated region
    $region42: #{tpu_custom_call.1} parent=1 // pred_check
      _
    $region43: #{tpu_custom_call.1} parent=1 // pred_check_branch
      %639 = sbr.rel (0) target = $region45
    $region44: #{tpu_custom_call.1} parent=1 // pred_region
      %640 = dma.done [#allocation3], 32
    $region45: #{tpu_custom_call.1} parent=1 // pred_fallthru
      _
    %641 = vsyncpa [#allocation3], 1

</llo_original>
